<compile_context>
chip_gen: v7x
topology: tpu7x:2x2x1
jax: 0.10.0
libtpu: 0.0.40
codegen_flags: <defaults>
</compile_context>

<pallas_src>
import functools

import jax
import jax.numpy as jnp
from jax.experimental import pallas as pl
from jax.experimental.pallas import tpu as pltpu

n_slots = 2
n_types = 2


def _round_up(x, m):
    return ((x + m - 1) // m) * m


def _critic_kernel(payoff_ref, packed_ref, out_ref, *, T, S):
    # payoff_ref : SMEM (T*S*S,) float32 -- scalar multipliers
    # packed_ref : VMEM (T + 2S, TB)     -- rows: atk_type (T), atk_ac (S), dfd_ac (S)
    # out_ref    : VMEM (1, TB)          -- lane-dense over batch
    x = packed_ref[...].astype(jnp.float32)              # upcast on load (v5e-safe)

    at = [x[t : t + 1, :] for t in range(T)]             # (1, TB) each
    aa = [x[T + j : T + j + 1, :] for j in range(S)]     # (1, TB) each
    da = [x[T + S + i : T + S + i + 1, :] for i in range(S)]  # (1, TB) each

    acc = None
    for j in range(S):
        for i in range(S):
            pair = aa[j] * da[i]                         # lane-parallel VPU mul
            # Type-mix with SMEM scalars (replaces the ~0.1%-utilized MXU dot).
            mix = payoff_ref[j * S + i] * at[0]          # t = 0 term
            for t in range(1, T):
                mix = mix + payoff_ref[t * S * S + j * S + i] * at[t]
            term = pair * mix
            acc = term if acc is None else acc + term
    out_ref[...] = acc.astype(out_ref.dtype)


def critic_forward(payoff, prior, r, atk_type, atk_prob, atk_ac, dfd_prob, dfd_ac,
                   *, block_b=1024, input_dtype=jnp.float32):
    """Pallas equivalent of Critic.forward.

    prior, r, atk_prob, dfd_prob are accepted (to mirror the PyTorch signature)
    but unused by the forward pass, exactly as in the reference module.
    """
    del prior, r, atk_prob, dfd_prob
    T, S, _ = payoff.shape
    B = atk_type.shape[0]
    F = T + 2 * S

    # 8 scalars -> SMEM (1-D, avoids 2-D SMEM padding blowup).
    payoff_flat = payoff.reshape(-1).astype(jnp.float32)                # (T*S*S,)

    # One packed, feature-major activation slab: batch on the lane axis.
    packed = jnp.concatenate([atk_type.T, atk_ac.T, dfd_ac.T], axis=0)  # (F, B)
    packed = packed.astype(input_dtype)

    # Lane-dense tiling over B (blocks are multiples of 128 lanes).
    tb = min(block_b, _round_up(B, 128))
    tb = _round_up(tb, 128)
    b_pad = _round_up(B, tb)
    if b_pad != B:
        packed = jnp.pad(packed, ((0, 0), (0, b_pad - B)))              # zero pad -> 0 output

    kernel = functools.partial(_critic_kernel, T=T, S=S)
    out = pl.pallas_call(
        kernel,
        out_shape=jax.ShapeDtypeStruct((1, b_pad), jnp.float32),
        grid=(b_pad // tb,),
        in_specs=[
            pl.BlockSpec(memory_space=pltpu.MemorySpace.SMEM),          # payoff scalars
            pl.BlockSpec((F, tb), lambda i: (0, i)),                    # packed activations
        ],
        out_specs=pl.BlockSpec((1, tb), lambda i: (0, i)),
        compiler_params=pltpu.CompilerParams(
            dimension_semantics=("parallel",)),                         # v7x: 2 TCs share B
    )(payoff_flat, packed)

    return out[:, :B].T                                                 # (B, 1)


def critic_reference(payoff, atk_type, atk_ac, dfd_ac):
    """Pure-JAX reference mirroring the torch code exactly."""
    T, S, _ = payoff.shape
    p = payoff.reshape(T, S * S)
    y = (atk_type @ p).reshape(-1, S, S)                       # (B, S, S)
    y = jnp.einsum("bj,bji->bi", atk_ac, y).reshape(-1, S, 1)  # (B, S, 1)
    y = jnp.einsum("bi,bio->bo", dfd_ac, y)                    # (B, 1)
    return y


if __name__ == "__main__":
    B = 8  # batch
    key = jax.random.PRNGKey(0)
    k_pay, k_type, k_aa, k_da, k_prior, k_r, k_ap, k_dp = jax.random.split(key, 8)

    # Deterministic "payoff" parameter (module __init__ argument): (n_types, n_slots, n_slots)
    payoff = jax.random.normal(k_pay, (n_types, n_slots, n_slots), dtype=jnp.float32)

    # Forward inputs (only atk_type, atk_ac, dfd_ac are actually consumed).
    atk_type = jax.nn.softmax(jax.random.normal(k_type, (B, n_types)), axis=-1)
    atk_ac = jax.nn.softmax(jax.random.normal(k_aa, (B, n_slots)), axis=-1)
    dfd_ac = jax.nn.softmax(jax.random.normal(k_da, (B, n_slots)), axis=-1)
    prior = jax.random.uniform(k_prior, (B, n_types))
    r = jax.random.normal(k_r, (B, 1))
    atk_prob = jax.nn.softmax(jax.random.normal(k_ap, (B, n_slots)), axis=-1)
    dfd_prob = jax.nn.softmax(jax.random.normal(k_dp, (B, n_slots)), axis=-1)

    ref = critic_reference(payoff, atk_type, atk_ac, dfd_ac)

    # Default f32 path: bit-tight vs reference.
    out = critic_forward(payoff, prior, r, atk_type, atk_prob, atk_ac, dfd_prob, dfd_ac)
    out = jax.block_until_ready(out)
    assert out.shape == (B, 1)
    assert jnp.allclose(out, ref, atol=1e-5, rtol=1e-5), (out, ref)

    # bf16-activation path (halves HBM traffic on v6e/v7x; f32 accumulation in-kernel).
    out_bf = critic_forward(payoff, prior, r, atk_type, atk_prob, atk_ac, dfd_prob,
                            dfd_ac, input_dtype=jnp.bfloat16)
    out_bf = jax.block_until_ready(out_bf)
    assert out_bf.shape == (B, 1)
    assert jnp.allclose(out_bf, ref, atol=5e-2, rtol=5e-2), (out_bf, ref)

    print("KERNEL_OK")
</pallas_src>

<mosaic_0001>
module attributes {stable_mosaic.version = 11 : i64} {
  func.func @_critic_kernel(%arg0: i32, %arg1: memref<8xf32, #tpu.memory_space<smem>>, %arg2: memref<6x128xf32, #tpu.memory_space<vmem>>, %arg3: memref<1x128xf32, #tpu.memory_space<vmem>>) attributes {dimension_semantics = [#tpu.dimension_semantics<parallel>], iteration_bounds = array<i64: 1>, scalar_prefetch = 0 : i64, scratch_operands = 0 : i64, tpu.core_type = #tpu.core_type<tc>, window_params = [{transform_indices = @transform_0, window_bounds = array<i64: 8>}, {transform_indices = @transform_1, window_bounds = array<i64: 6, 128>}, {transform_indices = @transform_2, window_bounds = array<i64: 1, 128>}]} {
    %c0 = arith.constant 0 : index
    %c0_0 = arith.constant 0 : index
    %0 = vector.load %arg2[%c0, %c0_0] : memref<6x128xf32, #tpu.memory_space<vmem>>, vector<6x128xf32>
    %1 = vector.extract_strided_slice %0 {offsets = [0, 0], sizes = [1, 128], strides = [1, 1]} : vector<6x128xf32> to vector<1x128xf32>
    %2 = vector.extract_strided_slice %0 {offsets = [1, 0], sizes = [1, 128], strides = [1, 1]} : vector<6x128xf32> to vector<1x128xf32>
    %3 = vector.extract_strided_slice %0 {offsets = [2, 0], sizes = [1, 128], strides = [1, 1]} : vector<6x128xf32> to vector<1x128xf32>
    %4 = vector.extract_strided_slice %0 {offsets = [3, 0], sizes = [1, 128], strides = [1, 1]} : vector<6x128xf32> to vector<1x128xf32>
    %5 = vector.extract_strided_slice %0 {offsets = [4, 0], sizes = [1, 128], strides = [1, 1]} : vector<6x128xf32> to vector<1x128xf32>
    %6 = vector.extract_strided_slice %0 {offsets = [5, 0], sizes = [1, 128], strides = [1, 1]} : vector<6x128xf32> to vector<1x128xf32>
    %7 = arith.mulf %3, %5 : vector<1x128xf32>
    %c0_1 = arith.constant 0 : index
    %8 = memref.load %arg1[%c0_1] : memref<8xf32, #tpu.memory_space<smem>>
    %9 = vector.broadcast %8 : f32 to vector<1x128xf32>
    %10 = arith.mulf %9, %1 : vector<1x128xf32>
    %c4 = arith.constant 4 : index
    %11 = memref.load %arg1[%c4] : memref<8xf32, #tpu.memory_space<smem>>
    %12 = vector.broadcast %11 : f32 to vector<1x128xf32>
    %13 = arith.mulf %12, %2 : vector<1x128xf32>
    %14 = arith.addf %10, %13 : vector<1x128xf32>
    %15 = arith.mulf %7, %14 : vector<1x128xf32>
    %16 = arith.mulf %3, %6 : vector<1x128xf32>
    %c1 = arith.constant 1 : index
    %17 = memref.load %arg1[%c1] : memref<8xf32, #tpu.memory_space<smem>>
    %18 = vector.broadcast %17 : f32 to vector<1x128xf32>
    %19 = arith.mulf %18, %1 : vector<1x128xf32>
    %c5 = arith.constant 5 : index
    %20 = memref.load %arg1[%c5] : memref<8xf32, #tpu.memory_space<smem>>
    %21 = vector.broadcast %20 : f32 to vector<1x128xf32>
    %22 = arith.mulf %21, %2 : vector<1x128xf32>
    %23 = arith.addf %19, %22 : vector<1x128xf32>
    %24 = arith.mulf %16, %23 : vector<1x128xf32>
    %25 = arith.addf %15, %24 : vector<1x128xf32>
    %26 = arith.mulf %4, %5 : vector<1x128xf32>
    %c2 = arith.constant 2 : index
    %27 = memref.load %arg1[%c2] : memref<8xf32, #tpu.memory_space<smem>>
    %28 = vector.broadcast %27 : f32 to vector<1x128xf32>
    %29 = arith.mulf %28, %1 : vector<1x128xf32>
    %c6 = arith.constant 6 : index
    %30 = memref.load %arg1[%c6] : memref<8xf32, #tpu.memory_space<smem>>
    %31 = vector.broadcast %30 : f32 to vector<1x128xf32>
    %32 = arith.mulf %31, %2 : vector<1x128xf32>
    %33 = arith.addf %29, %32 : vector<1x128xf32>
    %34 = arith.mulf %26, %33 : vector<1x128xf32>
    %35 = arith.addf %25, %34 : vector<1x128xf32>
    %36 = arith.mulf %4, %6 : vector<1x128xf32>
    %c3 = arith.constant 3 : index
    %37 = memref.load %arg1[%c3] : memref<8xf32, #tpu.memory_space<smem>>
    %38 = vector.broadcast %37 : f32 to vector<1x128xf32>
    %39 = arith.mulf %38, %1 : vector<1x128xf32>
    %c7 = arith.constant 7 : index
    %40 = memref.load %arg1[%c7] : memref<8xf32, #tpu.memory_space<smem>>
    %41 = vector.broadcast %40 : f32 to vector<1x128xf32>
    %42 = arith.mulf %41, %2 : vector<1x128xf32>
    %43 = arith.addf %39, %42 : vector<1x128xf32>
    %44 = arith.mulf %36, %43 : vector<1x128xf32>
    %45 = arith.addf %35, %44 : vector<1x128xf32>
    %c0_2 = arith.constant 0 : index
    %c0_3 = arith.constant 0 : index
    %46 = vector.load %arg3[%c0_2, %c0_3] : memref<1x128xf32, #tpu.memory_space<vmem>>, vector<1x128xf32>
    tpu.vector_store %arg3[%c0_2, %c0_3], %45 {strides = array<i32>} : memref<1x128xf32, #tpu.memory_space<vmem>>, vector<1x128xf32>,
    return
  }
  func.func @transform_0(%arg0: i32) -> i32 {
    %c0_i32 = arith.constant 0 : i32
    %c0_i32_0 = arith.constant 0 : i32
    return %c0_i32 : i32
  }
  func.func @transform_1(%arg0: i32) -> (i32, i32) {
    %c0_i32 = arith.constant 0 : i32
    %c0_i32_0 = arith.constant 0 : i32
    return %c0_i32, %arg0 : i32, i32
  }
  func.func @transform_2(%arg0: i32) -> (i32, i32) {
    %c0_i32 = arith.constant 0 : i32
    %c0_i32_0 = arith.constant 0 : i32
    return %c0_i32, %arg0 : i32, i32
  }
}

</mosaic_0001>

<llo_original>
// kernel: tpu_custom_call.1
$region0: #{tpu_custom_call.1}
  #allocation0 [shape = 'u32[]', space=smem, size = 0x4, offset = 0x4, fixed_abs, tag = 'smem constant byte address 0x4 - core index']
  #allocation1 [shape = 'u32[144,128]{1,0:T(1,128)}', space=vmem, size = 0x12000, scoped, tag = 'internal scratch']
  %s0 = inlined_call_operand.hbm [shape: f32[8], index: 0, kind: input, shape index: {}]
  %s1 = inlined_call_operand.hbm [shape: f32[6,128], index: 1, kind: input, shape index: {}]
  %s2 = inlined_call_operand.hbm [shape: f32[1,128], index: 2, kind: output, shape index: {}]
  %s3 = sld [smem:[#allocation0]]
  $region26: #{tpu_custom_call.1} parent=0
    _
  %s5 = ssub.s32 1, %s3
  %s6 = scalar_select 0, %s5, %s3
  $region1: #{tpu_custom_call.1} parent=0
    #allocation2 [shape = 'u8[512]{0}', space=smem, size = 0x200, scoped, tag = 'input window, operand 0, single buffered']
    #allocation3 [shape = 's32[1]{0}', space=sflag, size = 0x4, scoped, tag = 'scoped memory for tpu_custom_call.1']
    #allocation4 [shape = 's32[1]{0}', space=sflag, size = 0x4, scoped, tag = 'scoped memory for tpu_custom_call.1']
    #allocation5 [shape = 's32[1]{0}', space=sflag, size = 0x4, scoped, tag = 'scoped memory for tpu_custom_call.1']
    #allocation6 [shape = 'u8[4096]{0}', space=vmem, size = 0x1000, scoped, tag = 'input window, operand 1, single buffered']
    #allocation7 [shape = 'u8[512]{0}', space=vmem, size = 0x400, scoped, tag = 'output window, operand 0, single buffered']
    %7 = vsyncpa [#allocation5], 0
    %8 = vsyncpa [#allocation3], 0
    %9 = vsyncpa [#allocation4], 0
    // Predicated region
    $region2: #{tpu_custom_call.1} parent=1 // pred_check
      _
    $region3: #{tpu_custom_call.1} parent=1 // pred_check_branch
      %11 = sbr.rel (0) target = $region5
    $region4: #{tpu_custom_call.1} parent=1 // pred_region
      %s13 = ssub.s32 16, 16
      %14 = vsyncadd [#allocation5], %s13
      %17 = dma.hbm_to_smem %s0, 16, [#allocation2], [#allocation5]
    $region5: #{tpu_custom_call.1} parent=1 // pred_fallthru
      _
    // Predicated region
    $region6: #{tpu_custom_call.1} parent=1 // pred_check
      _
    $region7: #{tpu_custom_call.1} parent=1 // pred_check_branch
      %19 = sbr.rel (0) target = $region9
    $region8: #{tpu_custom_call.1} parent=1 // pred_region
      %s21 = ssub.s32 128, 128
      %22 = vsyncadd [#allocation3], %s21
      %s24 = sshll.u32 [#allocation6], 4
      %s25 = int_to_ptr.vmem [resolvable:$true] %s24
      %27 = dma.hbm_to_vmem [thread:$0]  %s1, 128, %s25, [#allocation3]
    $region9: #{tpu_custom_call.1} parent=1 // pred_fallthru
      _
    // Predicated region
    $region10: #{tpu_custom_call.1} parent=1 // pred_check
      _
    $region11: #{tpu_custom_call.1} parent=1 // pred_check_branch
      %29 = sbr.rel (0) target = $region13
    $region12: #{tpu_custom_call.1} parent=1 // pred_region
      %30 = dma.done [#allocation5], 16
    $region13: #{tpu_custom_call.1} parent=1 // pred_fallthru
      _
    // Predicated region
    $region14: #{tpu_custom_call.1} parent=1 // pred_check
      _
    $region15: #{tpu_custom_call.1} parent=1 // pred_check_branch
      %32 = sbr.rel (0) target = $region17
    $region16: #{tpu_custom_call.1} parent=1 // pred_region
      %33 = dma.done [#allocation3], 128
    $region17: #{tpu_custom_call.1} parent=1 // pred_fallthru
      _
    %34 = sfence
    %v35 = vld [vmem:[#allocation6] sm:$0x3f]
    %v37 = vrot.slane %v35, 2
    %v39 = vmul.f32 %v35, %v37
    %s40 = sld [smem:[#allocation2]]
    %v41 = vstv %s40
    %v42 = vmul.f32 %v41, %v35
    %s43 = sld [smem:[#allocation2 + $0x4]]
    %v44 = vstv %s43
    %v45 = vmul.f32 %v44, %v35
    %v47 = vrot.slane %v45, 1
    %v49 = vadd.f32 %v42, %v47
    %v51 = vrot.slane %v49, 6
    %v53 = vmul.f32 %v39, %v51
    %v54 = vrot.slane %v35, 3
    %v56 = vmul.f32 %v35, %v54
    %s57 = sld [smem:[#allocation2 + $0x1]]
    %v58 = vstv %s57
    %v59 = vmul.f32 %v58, %v35
    %s60 = sld [smem:[#allocation2 + $0x5]]
    %v61 = vstv %s60
    %v62 = vmul.f32 %v61, %v35
    %v64 = vrot.slane %v62, 1
    %v66 = vadd.f32 %v59, %v64
    %v68 = vrot.slane %v66, 6
    %v70 = vmul.f32 %v56, %v68
    %v71 = vadd.f32 %v53, %v70
    %v72 = vrot.slane %v35, 1
    %v74 = vmul.f32 %v35, %v72
    %s75 = sld [smem:[#allocation2 + $0x2]]
    %v76 = vstv %s75
    %v77 = vmul.f32 %v76, %v35
    %s78 = sld [smem:[#allocation2 + $0x6]]
    %v79 = vstv %s78
    %v80 = vmul.f32 %v79, %v35
    %v82 = vrot.slane %v80, 1
    %v84 = vadd.f32 %v77, %v82
    %v86 = vrot.slane %v84, 5
    %v88 = vmul.f32 %v74, %v86
    %v90 = vrot.slane %v88, 1
    %v92 = vadd.f32 %v71, %v90
    %s93 = sld [smem:[#allocation2 + $0x3]]
    %v94 = vstv %s93
    %v95 = vmul.f32 %v94, %v35
    %s96 = sld [smem:[#allocation2 + $0x7]]
    %v97 = vstv %s96
    %v98 = vmul.f32 %v97, %v35
    %v100 = vrot.slane %v98, 1
    %v102 = vadd.f32 %v95, %v100
    %v104 = vrot.slane %v102, 5
    %v106 = vmul.f32 %v39, %v104
    %v108 = vrot.slane %v106, 1
    %v110 = vadd.f32 %v92, %v108
    %111 = vst [vmem:[#allocation7 - $0x2] sm:$0x4] %v110
    // Predicated region
    $region18: #{tpu_custom_call.1} parent=1 // pred_check
      _
    $region19: #{tpu_custom_call.1} parent=1 // pred_check_branch
      %113 = sbr.rel (0) target = $region21
    $region20: #{tpu_custom_call.1} parent=1 // pred_region
      %s115 = ssub.s32 16, 16
      %116 = vsyncadd [#allocation4], %s115
      %s118 = sshll.u32 [#allocation7], 4
      %s119 = int_to_ptr.vmem [resolvable:$true] %s118
      %121 = dma.vmem_to_hbm [thread:$0]  %s119, 16, %s2, [#allocation4]
    $region21: #{tpu_custom_call.1} parent=1 // pred_fallthru
      _
    // Predicated region
    $region22: #{tpu_custom_call.1} parent=1 // pred_check
      _
    $region23: #{tpu_custom_call.1} parent=1 // pred_check_branch
      %123 = sbr.rel (0) target = $region25
    $region24: #{tpu_custom_call.1} parent=1 // pred_region
      %124 = dma.done [#allocation4], 16
    $region25: #{tpu_custom_call.1} parent=1 // pred_fallthru
      _
    %125 = vsyncpa [#allocation3], 1
    %126 = vsyncpa [#allocation4], 1
    %127 = vsyncpa [#allocation5], 1

</llo_original>
